<compile_context>
chip_gen: v7x
topology: tpu7x:2x2x1
jax: 0.10.0
libtpu: 0.0.40
codegen_flags: <defaults>
</compile_context>

<pallas_src>
import functools

import numpy as np
import jax
import jax.numpy as jnp
from jax import lax
from jax.experimental import pallas as pl
from jax.experimental.pallas import tpu as pltpu

_EPS = 1e-5


# ----------------------------------------------------------------------------
# Pallas kernel: fused BlazeBlock (stride=1), all batches in one invocation.
#   xflat_ref: (N*(H+4), (W+4)*Cin)  spatially padded input, batches stacked
#                                    along sublanes (4 zero rows between them)
#   wt_ref   : (5, (W+4)*Cin, W*Cpad) block-Toeplitz fused weight per kh tap
#                                     (dw5x5 + BN + 1x1 + BN + identity res)
#   b_ref    : (1, W*Cpad)            fused bias, tiled over w
#   out_ref  : (N, H, W*Cpad)
# ----------------------------------------------------------------------------
def _blaze_kernel(xflat_ref, wt_ref, b_ref, out_ref, *, N, H, Hp):
    Mv = N * Hp - 4                       # stacked "valid" conv rows (incl. 4 garbage)
    Wc = out_ref.shape[-1]

    # Dense 5x5 conv (everything folded): 5 row-tap matmuls, K=(W+4)*Cin.
    # Only the kh offset is a cheap sublane slice; kw shifts and the identity
    # residual live inside the Toeplitz weight built offline.
    acc = jnp.zeros((Mv, Wc), jnp.float32)
    for kh in range(5):
        acc = acc + jnp.dot(xflat_ref[kh:kh + Mv, :], wt_ref[kh],
                            preferred_element_type=jnp.float32)

    o = acc + b_ref[...]
    o = o * jax.nn.sigmoid(o)             # SiLU

    # Store only the valid rows of each batch (skip the 4 cross-batch rows).
    for b in range(N):
        out_ref[b] = o[b * Hp:b * Hp + H].astype(out_ref.dtype)


# ----------------------------------------------------------------------------
# Wrapper: NCHW in / NCHW out.  Layout plumbing (transpose/pad/reshape) only.
# ----------------------------------------------------------------------------
def blaze_block(x_nchw, kp):
    N, Cin, H, W = x_nchw.shape
    Hp, Wp = H + 4, W + 4
    Cout = kp["cout"]
    Cpad = kp["bias"].shape[1] // W
    assert Cout == Cin, "stride=1 BlazeBlock requires out_channels == in_channels"
    assert kp["wt"].shape == (5, Wp * Cin, W * Cpad)

    x = jnp.transpose(x_nchw, (0, 2, 3, 1))                       # NHWC
    xpad = jnp.pad(x, ((0, 0), (2, 2), (2, 2), (0, 0)))           # spatial pad 2
    xflat = xpad.reshape(N * Hp, Wp * Cin)                        # batch stacked on M

    kernel = functools.partial(_blaze_kernel, N=N, H=H, Hp=Hp)

    out = pl.pallas_call(
        kernel,
        out_shape=jax.ShapeDtypeStruct((N, H, W * Cpad), x.dtype),
        in_specs=[pl.BlockSpec(memory_space=pltpu.MemorySpace.VMEM)] * 3,
        out_specs=pl.BlockSpec(memory_space=pltpu.MemorySpace.VMEM),
    )(xflat, kp["wt"], kp["bias"])

    out = out.reshape(N, H, W, Cpad)[..., :Cout]                  # strip pad channels
    return jnp.transpose(out, (0, 3, 1, 2))                       # NCHW


# ----------------------------------------------------------------------------
# Parameter construction (deterministic) + offline folding.
# ----------------------------------------------------------------------------
def make_params(key, Cin, Cmid, Cout):
    ks = jax.random.split(key, 12)
    n = lambda i, shape, s=0.1: s * jax.random.normal(ks[i], shape, jnp.float32)
    u = lambda i, shape: jax.random.uniform(ks[i], shape, jnp.float32, 0.5, 1.5)
    return {
        # raw (PyTorch-convention) parameters of branch1
        "wdw": n(0, (Cmid, 1, 5, 5), 0.2), "bdw": n(1, (Cmid,)),
        "bn1": (u(2, (Cmid,)), n(3, (Cmid,)), n(4, (Cmid,)), u(5, (Cmid,))),
        "w1":  n(6, (Cout, Cmid, 1, 1), 0.5), "b1": n(7, (Cout,)),
        "bn2": (u(8, (Cout,)), n(9, (Cout,)), n(10, (Cout,)), u(11, (Cout,))),
    }


def fold_bn(w, b, bn):
    gamma, beta, mean, var = bn
    scale = gamma / jnp.sqrt(var + _EPS)                  # per output channel
    w_f = w * scale.reshape((-1,) + (1,) * (w.ndim - 1))
    b_f = (b - mean) * scale + beta
    return w_f, b_f


def to_kernel_params(p, Cin, H, W, lane_target=128):
    # Fold BNs into the two convs.
    wdw, bdw = fold_bn(p["wdw"], p["bdw"], p["bn1"])      # (Cmid,1,5,5),(Cmid,)
    w1_4d, b1 = fold_bn(p["w1"], p["b1"], p["bn2"])       # (Cout,Cmid,1,1),(Cout,)
    w1 = w1_4d[:, :, 0, 0]                                # (Cout, Cmid)
    Cmid, Cout = wdw.shape[0], w1.shape[0]
    assert Cout == Cin, "stride=1 residual fold requires Cout == Cin"
    m = Cmid // Cin                                       # depthwise multiplier

    # Fold depthwise 5x5 + 1x1 into a single dense 5x5 conv Wf[kh,kw,ci,co].
    dense = jnp.zeros((Cmid, Cin, 5, 5), jnp.float32)
    dense = dense.at[jnp.arange(Cmid), jnp.arange(Cmid) // m].set(wdw[:, 0])
    Wf = jnp.einsum('oj,jikl->klio', w1, dense)           # (5,5,Cin,Cout)
    bf = w1 @ bdw + b1                                    # (Cout,)

    # Zero-pad output channels so each output row is a full 128-lane multiple.
    Cpad = max(Cout, max(1, lane_target // W))
    Wf_p = jnp.pad(Wf, ((0, 0), (0, 0), (0, 0), (0, Cpad - Cout)))
    bf_p = jnp.pad(bf, (0, Cpad - Cout))

    # Block-Toeplitz expansion along W:
    #   WT[kh, (w+kw)*Cin + ci, w*Cpad + co] = Wf[kh, kw, ci, co]
    Wp = W + 4
    S = np.zeros((5, W, Wp), np.float32)
    for kw in range(5):
        for w in range(W):
            S[kw, w, w + kw] = 1.0
    WT = jnp.einsum('awq,kaio->kqiwo', jnp.asarray(S), Wf_p)
    WT = WT.reshape(5, Wp * Cin, W * Cpad)

    # Fold the identity residual (stride=1 shortcut) into the centre kh tap:
    #   out[h, w, ci] += x[h, w, ci] = xpad[h+2, w+2, ci]
    Rmat = np.zeros((Wp * Cin, W * Cpad), np.float32)
    for w in range(W):
        for ci in range(Cin):
            Rmat[(w + 2) * Cin + ci, w * Cpad + ci] = 1.0
    WT = WT.at[2].add(jnp.asarray(Rmat))

    bias = jnp.tile(bf_p, W).reshape(1, W * Cpad)
    return {"wt": WT, "bias": bias, "cout": Cout}


# ----------------------------------------------------------------------------
# Pure-JAX reference (mirrors the PyTorch forward, NCHW, un-fused BN).
# ----------------------------------------------------------------------------
def reference(x, p):
    def bn(y, bn_p):
        g, b, m, v = (t[None, :, None, None] for t in bn_p)
        return (y - m) / jnp.sqrt(v + _EPS) * g + b

    def conv(y, w, b, pad, groups=1):
        out = lax.conv_general_dilated(
            y, w, (1, 1), ((pad, pad), (pad, pad)),
            feature_group_count=groups,
            dimension_numbers=("NCHW", "OIHW", "NCHW"))
        return out + b[None, :, None, None]

    y = conv(x, p["wdw"], p["bdw"], 2, groups=x.shape[1])   # depthwise 5x5
    y = bn(y, p["bn1"])
    y = conv(y, p["w1"], p["b1"], 0)                        # 1x1
    y = bn(y, p["bn2"])
    return jax.nn.silu(y + x)                               # stride=1 shortcut


# ----------------------------------------------------------------------------
if __name__ == "__main__":
    key = jax.random.PRNGKey(0)
    k_x, k_p = jax.random.split(key)

    N, Cin, H, W = 2, 4, 16, 16
    Cmid, Cout = 4, 4        # BlazeBlock defaults: mid=in; stride=1 => out==in

    x = jax.random.normal(k_x, (N, Cin, H, W), jnp.float32)
    raw_params = make_params(k_p, Cin, Cmid, Cout)
    kparams = to_kernel_params(raw_params, Cin, H, W)

    out = jax.block_until_ready(blaze_block(x, kparams))
    ref = jax.block_until_ready(reference(x, raw_params))

    assert out.shape == (N, Cout, H, W), out.shape
    assert jnp.allclose(out, ref, rtol=2e-3, atol=2e-3), (
        float(jnp.max(jnp.abs(out - ref))))

    print("KERNEL_OK")
</pallas_src>

<mosaic_0001>
module attributes {stable_mosaic.version = 11 : i64} {
  func.func @_blaze_kernel(%arg0: memref<40x80xf32, #tpu.memory_space<vmem>>, %arg1: memref<5x80x128xf32, #tpu.memory_space<vmem>>, %arg2: memref<1x128xf32, #tpu.memory_space<vmem>>, %arg3: memref<2x16x128xf32, #tpu.memory_space<vmem>>) attributes {dimension_semantics = [], scalar_prefetch = 0 : i64, scratch_operands = 0 : i64, tpu.core_type = #tpu.core_type<tc>} {
    %cst = arith.constant 0.000000e+00 : f32
    %0 = vector.broadcast %cst : f32 to vector<36x128xf32>
    %c0 = arith.constant 0 : index
    %c0_0 = arith.constant 0 : index
    %1 = vector.load %arg0[%c0, %c0_0] : memref<40x80xf32, #tpu.memory_space<vmem>>, vector<36x80xf32>
    %c0_1 = arith.constant 0 : index
    %c0_2 = arith.constant 0 : index
    %c0_3 = arith.constant 0 : index
    %2 = vector.load %arg1[%c0_1, %c0_2, %c0_3] : memref<5x80x128xf32, #tpu.memory_space<vmem>>, vector<1x80x128xf32>
    %3 = vector.shape_cast %2 : vector<1x80x128xf32> to vector<80x128xf32>
    %cst_4 = arith.constant dense<0.000000e+00> : vector<36x128xf32>
    %4 = tpu.matmul %1, %3, %cst_4 {dimension_numbers = #tpu.dot_dimension_numbers<[1], [0], [0], [1], [0, 0, 1, 1], [], []>} : vector<36x80xf32>, vector<80x128xf32>, vector<36x128xf32> -> vector<36x128xf32>
    %5 = arith.addf %0, %4 : vector<36x128xf32>
    %c1 = arith.constant 1 : index
    %c0_5 = arith.constant 0 : index
    %6 = vector.load %arg0[%c1, %c0_5] : memref<40x80xf32, #tpu.memory_space<vmem>>, vector<36x80xf32>
    %c1_6 = arith.constant 1 : index
    %c0_7 = arith.constant 0 : index
    %c0_8 = arith.constant 0 : index
    %7 = vector.load %arg1[%c1_6, %c0_7, %c0_8] : memref<5x80x128xf32, #tpu.memory_space<vmem>>, vector<1x80x128xf32>
    %8 = vector.shape_cast %7 : vector<1x80x128xf32> to vector<80x128xf32>
    %cst_9 = arith.constant dense<0.000000e+00> : vector<36x128xf32>
    %9 = tpu.matmul %6, %8, %cst_9 {dimension_numbers = #tpu.dot_dimension_numbers<[1], [0], [0], [1], [0, 0, 1, 1], [], []>} : vector<36x80xf32>, vector<80x128xf32>, vector<36x128xf32> -> vector<36x128xf32>
    %10 = arith.addf %5, %9 : vector<36x128xf32>
    %c2 = arith.constant 2 : index
    %c0_10 = arith.constant 0 : index
    %11 = vector.load %arg0[%c2, %c0_10] : memref<40x80xf32, #tpu.memory_space<vmem>>, vector<36x80xf32>
    %c2_11 = arith.constant 2 : index
    %c0_12 = arith.constant 0 : index
    %c0_13 = arith.constant 0 : index
    %12 = vector.load %arg1[%c2_11, %c0_12, %c0_13] : memref<5x80x128xf32, #tpu.memory_space<vmem>>, vector<1x80x128xf32>
    %13 = vector.shape_cast %12 : vector<1x80x128xf32> to vector<80x128xf32>
    %cst_14 = arith.constant dense<0.000000e+00> : vector<36x128xf32>
    %14 = tpu.matmul %11, %13, %cst_14 {dimension_numbers = #tpu.dot_dimension_numbers<[1], [0], [0], [1], [0, 0, 1, 1], [], []>} : vector<36x80xf32>, vector<80x128xf32>, vector<36x128xf32> -> vector<36x128xf32>
    %15 = arith.addf %10, %14 : vector<36x128xf32>
    %c3 = arith.constant 3 : index
    %c0_15 = arith.constant 0 : index
    %16 = vector.load %arg0[%c3, %c0_15] : memref<40x80xf32, #tpu.memory_space<vmem>>, vector<36x80xf32>
    %c3_16 = arith.constant 3 : index
    %c0_17 = arith.constant 0 : index
    %c0_18 = arith.constant 0 : index
    %17 = vector.load %arg1[%c3_16, %c0_17, %c0_18] : memref<5x80x128xf32, #tpu.memory_space<vmem>>, vector<1x80x128xf32>
    %18 = vector.shape_cast %17 : vector<1x80x128xf32> to vector<80x128xf32>
    %cst_19 = arith.constant dense<0.000000e+00> : vector<36x128xf32>
    %19 = tpu.matmul %16, %18, %cst_19 {dimension_numbers = #tpu.dot_dimension_numbers<[1], [0], [0], [1], [0, 0, 1, 1], [], []>} : vector<36x80xf32>, vector<80x128xf32>, vector<36x128xf32> -> vector<36x128xf32>
    %20 = arith.addf %15, %19 : vector<36x128xf32>
    %c4 = arith.constant 4 : index
    %c0_20 = arith.constant 0 : index
    %21 = vector.load %arg0[%c4, %c0_20] : memref<40x80xf32, #tpu.memory_space<vmem>>, vector<36x80xf32>
    %c4_21 = arith.constant 4 : index
    %c0_22 = arith.constant 0 : index
    %c0_23 = arith.constant 0 : index
    %22 = vector.load %arg1[%c4_21, %c0_22, %c0_23] : memref<5x80x128xf32, #tpu.memory_space<vmem>>, vector<1x80x128xf32>
    %23 = vector.shape_cast %22 : vector<1x80x128xf32> to vector<80x128xf32>
    %cst_24 = arith.constant dense<0.000000e+00> : vector<36x128xf32>
    %24 = tpu.matmul %21, %23, %cst_24 {dimension_numbers = #tpu.dot_dimension_numbers<[1], [0], [0], [1], [0, 0, 1, 1], [], []>} : vector<36x80xf32>, vector<80x128xf32>, vector<36x128xf32> -> vector<36x128xf32>
    %25 = arith.addf %20, %24 : vector<36x128xf32>
    %c0_25 = arith.constant 0 : index
    %c0_26 = arith.constant 0 : index
    %26 = vector.load %arg2[%c0_25, %c0_26] : memref<1x128xf32, #tpu.memory_space<vmem>>, vector<1x128xf32>
    %27 = vector.broadcast %26 : vector<1x128xf32> to vector<36x128xf32>
    %28 = arith.addf %25, %27 : vector<36x128xf32>
    %29 = arith.negf %28 : vector<36x128xf32>
    %30 = math.exp %29 : vector<36x128xf32>
    %cst_27 = arith.constant 1.000000e+00 : f32
    %31 = vector.broadcast %cst_27 : f32 to vector<36x128xf32>
    %32 = arith.addf %31, %30 : vector<36x128xf32>
    %33 = arith.divf %31, %32 : vector<36x128xf32>
    %34 = arith.mulf %28, %33 : vector<36x128xf32>
    %35 = vector.extract_strided_slice %34 {offsets = [0, 0], sizes = [16, 128], strides = [1, 1]} : vector<36x128xf32> to vector<16x128xf32>
    %c0_28 = arith.constant 0 : index
    %c0_29 = arith.constant 0 : index
    %c0_30 = arith.constant 0 : index
    %36 = vector.load %arg3[%c0_28, %c0_29, %c0_30] : memref<2x16x128xf32, #tpu.memory_space<vmem>>, vector<1x16x128xf32>
    %37 = vector.shape_cast %36 : vector<1x16x128xf32> to vector<16x128xf32>
    %38 = vector.shape_cast %35 : vector<16x128xf32> to vector<1x16x128xf32>
    tpu.vector_store %arg3[%c0_28, %c0_29, %c0_30], %38 {strides = array<i32>} : memref<2x16x128xf32, #tpu.memory_space<vmem>>, vector<1x16x128xf32>,
    %39 = vector.extract_strided_slice %34 {offsets = [20, 0], sizes = [16, 128], strides = [1, 1]} : vector<36x128xf32> to vector<16x128xf32>
    %c1_31 = arith.constant 1 : index
    %c0_32 = arith.constant 0 : index
    %c0_33 = arith.constant 0 : index
    %40 = vector.load %arg3[%c1_31, %c0_32, %c0_33] : memref<2x16x128xf32, #tpu.memory_space<vmem>>, vector<1x16x128xf32>
    %41 = vector.shape_cast %40 : vector<1x16x128xf32> to vector<16x128xf32>
    %42 = vector.shape_cast %39 : vector<16x128xf32> to vector<1x16x128xf32>
    tpu.vector_store %arg3[%c1_31, %c0_32, %c0_33], %42 {strides = array<i32>} : memref<2x16x128xf32, #tpu.memory_space<vmem>>, vector<1x16x128xf32>,
    return
  }
}

</mosaic_0001>

<llo_original>
// kernel: tpu_custom_call.1
$region0: #{tpu_custom_call.1}
  #allocation0 [shape = 'u32[]', space=smem, size = 0x4, offset = 0x4, fixed_abs, tag = 'smem constant byte address 0x4 - core index']
  #allocation1 [shape = 'u32[144,128]{1,0:T(1,128)}', space=vmem, size = 0x12000, scoped, tag = 'internal scratch']
  %s0 = inlined_call_operand.hbm [shape: f32[40,80], index: 0, kind: input, shape index: {}]
  %s1 = inlined_call_operand.hbm [shape: f32[5,80,128], index: 1, kind: input, shape index: {}]
  %s2 = inlined_call_operand.vmem [shape: f32[1,128], index: 2, kind: input, shape index: {}]
  %s3 = inlined_call_operand.hbm [shape: f32[2,16,128], index: 3, kind: output, shape index: {}]
  %s4 = sld [smem:[#allocation0]]
  $region30: #{tpu_custom_call.1} parent=0
    _
  %s6 = ssub.s32 1, %s4
  %s7 = scalar_select 0, %s6, %s4
  $region1: #{tpu_custom_call.1} parent=0
    #allocation2 [shape = 'u8[20480]{0}', space=vmem, size = 0x5000, scoped, tag = 'input window, operand 0, single buffered']
    #allocation3 [shape = 's32[1]{0}', space=sflag, size = 0x4, scoped, tag = 'scoped memory for tpu_custom_call.1']
    #allocation4 [shape = 's32[1]{0}', space=sflag, size = 0x4, scoped, tag = 'scoped memory for tpu_custom_call.1']
    #allocation5 [shape = 'u8[204800]{0}', space=vmem, size = 0x32000, scoped, tag = 'input window, operand 1, single buffered']
    #allocation6 [shape = 's32[1]{0}', space=sflag, size = 0x4, scoped, tag = 'scoped memory for tpu_custom_call.1']
    #allocation7 [shape = 'u8[16384]{0}', space=vmem, size = 0x4000, scoped, tag = 'output window, operand 0, single buffered']
    %8 = vsyncpa [#allocation3], 0
    %9 = vsyncpa [#allocation6], 0
    %10 = vsyncpa [#allocation4], 0
    // Predicated region
    $region2: #{tpu_custom_call.1} parent=1 // pred_check
      _
    $region3: #{tpu_custom_call.1} parent=1 // pred_check_branch
      %12 = sbr.rel (0) target = $region5
    $region4: #{tpu_custom_call.1} parent=1 // pred_region
      %s14 = ssub.s32 640, 640
      %15 = vsyncadd [#allocation3], %s14
      %s16 = sshll.u32 [#allocation2], 4
      %s17 = int_to_ptr.vmem [resolvable:$true] %s16
      %22 = dma.hbm_to_vmem [thread:$0]  %s0, 640, %s17, [#allocation3], 128, 128, 8
    $region5: #{tpu_custom_call.1} parent=1 // pred_fallthru
      _
    // Predicated region
    $region6: #{tpu_custom_call.1} parent=1 // pred_check
      _
    $region7: #{tpu_custom_call.1} parent=1 // pred_check_branch
      %24 = sbr.rel (0) target = $region9
    $region8: #{tpu_custom_call.1} parent=1 // pred_region
      %s26 = ssub.s32 6400, 6400
      %27 = vsyncadd [#allocation6], %s26
      %s28 = sshll.u32 [#allocation5], 4
      %s29 = int_to_ptr.vmem [resolvable:$true] %s28
      %34 = dma.hbm_to_vmem [thread:$0]  %s1, 6400, %s29, [#allocation6], 128, 128, 8
    $region9: #{tpu_custom_call.1} parent=1 // pred_fallthru
      _
    // Predicated region
    $region10: #{tpu_custom_call.1} parent=1 // pred_check
      _
    $region11: #{tpu_custom_call.1} parent=1 // pred_check_branch
      %36 = sbr.rel (0) target = $region13
    $region12: #{tpu_custom_call.1} parent=1 // pred_region
      _
    $region13: #{tpu_custom_call.1} parent=1 // pred_fallthru
      _
    // Predicated region
    $region14: #{tpu_custom_call.1} parent=1 // pred_check
      _
    $region15: #{tpu_custom_call.1} parent=1 // pred_check_branch
      %38 = sbr.rel (0) target = $region17
    $region16: #{tpu_custom_call.1} parent=1 // pred_region
      %39 = dma.done [#allocation3], 640
    $region17: #{tpu_custom_call.1} parent=1 // pred_fallthru
      _
    // Predicated region
    $region18: #{tpu_custom_call.1} parent=1 // pred_check
      _
    $region19: #{tpu_custom_call.1} parent=1 // pred_check_branch
      %41 = sbr.rel (0) target = $region21
    $region20: #{tpu_custom_call.1} parent=1 // pred_region
      %42 = dma.done [#allocation6], 6400
    $region21: #{tpu_custom_call.1} parent=1 // pred_fallthru
      _
    %v43 = vld [vmem:[#allocation2] sm:$0xff]
    %v44 = vld [vmem:[#allocation2 + $0x8] sm:$0xff]
    %v45 = vld [vmem:[#allocation2 + $0x10] sm:$0xff]
    %v46 = vld [vmem:[#allocation2 + $0x18] sm:$0xff]
    %v47 = vld [vmem:[#allocation2 + $0x20] sm:$0xf]
    %v48 = vld [vmem:[#allocation5] sm:$0xff]
    %v49 = vld [vmem:[#allocation5 + $0x8] sm:$0xff]
    %v50 = vld [vmem:[#allocation5 + $0x10] sm:$0xff]
    %v51 = vld [vmem:[#allocation5 + $0x18] sm:$0xff]
    %v52 = vld [vmem:[#allocation5 + $0x20] sm:$0xff]
    %v53 = vld [vmem:[#allocation5 + $0x28] sm:$0xff]
    %v54 = vld [vmem:[#allocation5 + $0x30] sm:$0xff]
    %v55 = vld [vmem:[#allocation5 + $0x38] sm:$0xff]
    %v56 = vld [vmem:[#allocation5 + $0x40] sm:$0xff]
    %v57 = vld [vmem:[#allocation5 + $0x48] sm:$0xff]
    %v58 = vld [vmem:[#allocation2 + $0x1] sm:$0xff]
    %v59 = vld [vmem:[#allocation2 + $0x9] sm:$0xff]
    %v60 = vld [vmem:[#allocation2 + $0x11] sm:$0xff]
    %v61 = vld [vmem:[#allocation2 + $0x19] sm:$0xff]
    %v62 = vld [vmem:[#allocation2 + $0x21] sm:$0xf]
    %s63 = scalar_lea.vmem [#allocation5], 80
    %v64 = vld [vmem:[%s63] sm:$0xff]
    %v65 = vld [vmem:[%s63 + $0x8] sm:$0xff]
    %v66 = vld [vmem:[%s63 + $0x10] sm:$0xff]
    %v67 = vld [vmem:[%s63 + $0x18] sm:$0xff]
    %v68 = vld [vmem:[%s63 + $0x20] sm:$0xff]
    %v69 = vld [vmem:[%s63 + $0x28] sm:$0xff]
    %v70 = vld [vmem:[%s63 + $0x30] sm:$0xff]
    %v71 = vld [vmem:[%s63 + $0x38] sm:$0xff]
    %v72 = vld [vmem:[%s63 + $0x40] sm:$0xff]
    %v73 = vld [vmem:[%s63 + $0x48] sm:$0xff]
    %vm74 = vcmask 654336
    %v76 = vsel %vm74, %v58, 0
    %v79 = vsel %vm74, %v59, 0
    %v82 = vsel %vm74, %v60, 0
    %v85 = vsel %vm74, %v61, 0
    %v88 = vsel %vm74, %v62, 0
    %90 = vmatprep.subr.mxu0 0.0
    %91 = vmatpush1.msra.mxu0 %v64
    %92 = vmatprep.subr.mxu0 0.0
    %93 = vmatpush1.msra.mxu0 %v65
    %94 = vmatprep.subr.mxu0 0.0
    %95 = vmatpush1.msra.mxu0 %v66
    %96 = vmatprep.subr.mxu0 0.0
    %97 = vmatpush1.msra.mxu0 %v67
    %98 = vmatprep.subr.mxu0 0.0
    %99 = vmatpush1.msra.mxu0 %v68
    %100 = vmatprep.subr.mxu0 0.0
    %101 = vmatpush1.msra.mxu0 %v69
    %102 = vmatprep.subr.mxu0 0.0
    %103 = vmatpush1.msra.mxu0 %v70
    %104 = vmatprep.subr.mxu0 0.0
    %105 = vmatpush1.msra.mxu0 %v71
    %106 = vmatprep.subr.mxu0 0.0
    %107 = vmatpush1.msra.mxu0 %v72
    %108 = vmatprep.subr.mxu0 0.0
    %109 = vmatpush1.msra.mxu0 %v73
    %110 = vmatprep.subr.mxu0 0.0
    %111 = vmatpush1.msra.mxu0 0.0
    %112 = vmatprep.subr.mxu0 0.0
    %113 = vmatpush1.msra.mxu0 0.0
    %114 = vmatprep.subr.mxu0 0.0
    %115 = vmatpush1.msra.mxu0 0.0
    %116 = vmatprep.subr.mxu0 0.0
    %117 = vmatpush1.msra.mxu0 0.0
    %118 = vmatprep.subr.mxu0 0.0
    %119 = vmatpush1.msra.mxu0 0.0
    %120 = vmatprep.subr.mxu0 0.0
    %121 = vmatpush1.msra.mxu0 0.0
    %122 = vmatprep.subr.mxu0 0.0
    %123 = vmatpush1.msra.mxu0 0.0
    %124 = vmatprep.subr.mxu0 0.0
    %125 = vmatpush1.msra.mxu0 0.0
    %126 = vmatprep.subr.mxu0 0.0
    %127 = vmatpush1.msra.mxu0 0.0
    %128 = vmatprep.subr.mxu0 0.0
    %129 = vmatpush1.msra.mxu0 0.0
    %130 = vmatprep.subr.mxu0 0.0
    %131 = vmatpush1.msra.mxu0 0.0
    %132 = vmatprep.subr.mxu0 0.0
    %133 = vmatpush1.msra.mxu0 0.0
    %134 = vmatprep.subr.mxu0 0.0
    %135 = vmatpush1.msra.mxu0 0.0
    %136 = vmatprep.subr.mxu0 0.0
    %137 = vmatpush1.msra.mxu0 0.0
    %138 = vmatprep.subr.mxu0 0.0
    %139 = vmatpush1.msra.mxu0 0.0
    %140 = vmatprep.subr.mxu0 0.0
    %141 = vmatpush1.msra.mxu0 0.0
    %142 = vmatprep.subr.mxu0 0.0
    %143 = vmatpush1.msra.mxu0 0.0
    %144 = vmatprep.subr.mxu0 0.0
    %145 = vmatpush1.msra.mxu0 0.0
    %146 = vmatprep.subr.mxu0 0.0
    %147 = vmatpush1.msra.mxu0 0.0
    %148 = vmatprep.subr.mxu0 0.0
    %149 = vmatpush1.msra.mxu0 0.0
    %150 = vmatprep.subr.mxu0 0.0
    %151 = vmatpush1.msra.mxu0 0.0
    %152 = vmatprep.subr.mxu0 0.0
    %153 = vmatpush1.msra.mxu0 0.0
    %154 = vmatprep.mubr.f32.mxu0 0.0
    %155 = vmatmul.mubr.f32.gmra.mrb[0].mxu0 %v76
    %v156 = vpop.f32.mrb[0].mxu0
    %v157 = vadd.f32 0.0, %v156
    %v158 = vpop.f32.mrb[0].mxu0
    %159 = vmatprep.mubr.f32.mxu0 0.0
    %160 = vmatmul.mubr.f32.gmra.mrb[0].mxu0 %v79
    %v161 = vpop.f32.mrb[0].mxu0
    %v162 = vadd.f32 0.0, %v161
    %v163 = vpop.f32.mrb[0].mxu0
    %164 = vmatprep.mubr.f32.mxu0 0.0
    %165 = vmatmul.mubr.f32.gmra.mrb[0].mxu0 %v82
    %v166 = vpop.f32.mrb[0].mxu0
    %v167 = vadd.f32 0.0, %v166
    %v168 = vpop.f32.mrb[0].mxu0
    %169 = vmatprep.mubr.f32.mxu0 0.0
    %170 = vmatmul.mubr.f32.gmra.mrb[0].mxu0 %v85
    %v171 = vpop.f32.mrb[0].mxu0
    %v172 = vadd.f32 0.0, %v171
    %v173 = vpop.f32.mrb[0].mxu0
    %174 = vmatprep.mubr.f32.mxu0 0.0
    %175 = vmatmul.mubr.f32.gmra.mrb[0].mxu0 %v88
    %v176 = vpop.f32.mrb[0].mxu0
    %v177 = vadd.f32 0.0, %v176
    %v178 = vpop.f32.mrb[0].mxu0
    %179 = vdwg.mxu0
    %v181 = vsel %vm74, %v43, 0
    %v184 = vsel %vm74, %v44, 0
    %v187 = vsel %vm74, %v45, 0
    %v190 = vsel %vm74, %v46, 0
    %v193 = vsel %vm74, %v47, 0
    %195 = vmatprep.subr.mxu0 0.0
    %196 = vmatpush1.msra.mxu0 %v48
    %197 = vmatprep.subr.mxu0 0.0
    %198 = vmatpush1.msra.mxu0 %v49
    %199 = vmatprep.subr.mxu0 0.0
    %200 = vmatpush1.msra.mxu0 %v50
    %201 = vmatprep.subr.mxu0 0.0
    %202 = vmatpush1.msra.mxu0 %v51
    %203 = vmatprep.subr.mxu0 0.0
    %204 = vmatpush1.msra.mxu0 %v52
    %205 = vmatprep.subr.mxu0 0.0
    %206 = vmatpush1.msra.mxu0 %v53
    %207 = vmatprep.subr.mxu0 0.0
    %208 = vmatpush1.msra.mxu0 %v54
    %209 = vmatprep.subr.mxu0 0.0
    %210 = vmatpush1.msra.mxu0 %v55
    %211 = vmatprep.subr.mxu0 0.0
    %212 = vmatpush1.msra.mxu0 %v56
    %213 = vmatprep.subr.mxu0 0.0
    %214 = vmatpush1.msra.mxu0 %v57
    %215 = vmatprep.subr.mxu0 0.0
    %216 = vmatpush1.msra.mxu0 0.0
    %217 = vmatprep.subr.mxu0 0.0
    %218 = vmatpush1.msra.mxu0 0.0
    %219 = vmatprep.subr.mxu0 0.0
    %220 = vmatpush1.msra.mxu0 0.0
    %221 = vmatprep.subr.mxu0 0.0
    %222 = vmatpush1.msra.mxu0 0.0
    %223 = vmatprep.subr.mxu0 0.0
    %224 = vmatpush1.msra.mxu0 0.0
    %225 = vmatprep.subr.mxu0 0.0
    %226 = vmatpush1.msra.mxu0 0.0
    %227 = vmatprep.subr.mxu0 0.0
    %228 = vmatpush1.msra.mxu0 0.0
    %229 = vmatprep.subr.mxu0 0.0
    %230 = vmatpush1.msra.mxu0 0.0
    %231 = vmatprep.subr.mxu0 0.0
    %232 = vmatpush1.msra.mxu0 0.0
    %233 = vmatprep.subr.mxu0 0.0
    %234 = vmatpush1.msra.mxu0 0.0
    %235 = vmatprep.subr.mxu0 0.0
    %236 = vmatpush1.msra.mxu0 0.0
    %237 = vmatprep.subr.mxu0 0.0
    %238 = vmatpush1.msra.mxu0 0.0
    %239 = vmatprep.subr.mxu0 0.0
    %240 = vmatpush1.msra.mxu0 0.0
    %241 = vmatprep.subr.mxu0 0.0
    %242 = vmatpush1.msra.mxu0 0.0
    %243 = vmatprep.subr.mxu0 0.0
    %244 = vmatpush1.msra.mxu0 0.0
    %245 = vmatprep.subr.mxu0 0.0
    %246 = vmatpush1.msra.mxu0 0.0
    %247 = vmatprep.subr.mxu0 0.0
    %248 = vmatpush1.msra.mxu0 0.0
    %249 = vmatprep.subr.mxu0 0.0
    %250 = vmatpush1.msra.mxu0 0.0
    %251 = vmatprep.subr.mxu0 0.0
    %252 = vmatpush1.msra.mxu0 0.0
    %253 = vmatprep.subr.mxu0 0.0
    %254 = vmatpush1.msra.mxu0 0.0
    %255 = vmatprep.subr.mxu0 0.0
    %256 = vmatpush1.msra.mxu0 0.0
    %257 = vmatprep.subr.mxu0 0.0
    %258 = vmatpush1.msra.mxu0 0.0
    %259 = vmatprep.mubr.f32.mxu0 0.0
    %260 = vmatmul.mubr.f32.gmra.mrb[0].mxu0 %v181
    %v261 = vpop.f32.mrb[0].mxu0
    %v262 = vadd.f32 %v157, %v261
    %v263 = vpop.f32.mrb[0].mxu0
    %264 = vmatprep.mubr.f32.mxu0 0.0
    %265 = vmatmul.mubr.f32.gmra.mrb[0].mxu0 %v184
    %v266 = vpop.f32.mrb[0].mxu0
    %v267 = vadd.f32 %v162, %v266
    %v268 = vpop.f32.mrb[0].mxu0
    %269 = vmatprep.mubr.f32.mxu0 0.0
    %270 = vmatmul.mubr.f32.gmra.mrb[0].mxu0 %v187
    %v271 = vpop.f32.mrb[0].mxu0
    %v272 = vadd.f32 %v167, %v271
    %v273 = vpop.f32.mrb[0].mxu0
    %274 = vmatprep.mubr.f32.mxu0 0.0
    %275 = vmatmul.mubr.f32.gmra.mrb[0].mxu0 %v190
    %v276 = vpop.f32.mrb[0].mxu0
    %v277 = vadd.f32 %v172, %v276
    %v278 = vpop.f32.mrb[0].mxu0
    %279 = vmatprep.mubr.f32.mxu0 0.0
    %280 = vmatmul.mubr.f32.gmra.mrb[0].mxu0 %v193
    %v281 = vpop.f32.mrb[0].mxu0
    %v282 = vadd.f32 %v177, %v281
    %v283 = vpop.f32.mrb[0].mxu0
    %284 = vdwg.mxu0
    %v285 = vld [vmem:[#allocation2 + $0x2] sm:$0xff]
    %v286 = vld [vmem:[#allocation2 + $0xa] sm:$0xff]
    %v287 = vld [vmem:[#allocation2 + $0x12] sm:$0xff]
    %v288 = vld [vmem:[#allocation2 + $0x1a] sm:$0xff]
    %v289 = vld [vmem:[#allocation2 + $0x22] sm:$0xf]
    %s290 = scalar_lea.vmem [#allocation5], 160
    %v291 = vld [vmem:[%s290] sm:$0xff]
    %v292 = vld [vmem:[%s290 + $0x8] sm:$0xff]
    %v293 = vld [vmem:[%s290 + $0x10] sm:$0xff]
    %v294 = vld [vmem:[%s290 + $0x18] sm:$0xff]
    %v295 = vld [vmem:[%s290 + $0x20] sm:$0xff]
    %v296 = vld [vmem:[%s290 + $0x28] sm:$0xff]
    %v297 = vld [vmem:[%s290 + $0x30] sm:$0xff]
    %v298 = vld [vmem:[%s290 + $0x38] sm:$0xff]
    %v299 = vld [vmem:[%s290 + $0x40] sm:$0xff]
    %v300 = vld [vmem:[%s290 + $0x48] sm:$0xff]
    %v302 = vsel %vm74, %v285, 0
    %v305 = vsel %vm74, %v286, 0
    %v308 = vsel %vm74, %v287, 0
    %v311 = vsel %vm74, %v288, 0
    %v314 = vsel %vm74, %v289, 0
    %316 = vmatprep.subr.mxu0 0.0
    %317 = vmatpush1.msra.mxu0 %v291
    %318 = vmatprep.subr.mxu0 0.0
    %319 = vmatpush1.msra.mxu0 %v292
    %320 = vmatprep.subr.mxu0 0.0
    %321 = vmatpush1.msra.mxu0 %v293
    %322 = vmatprep.subr.mxu0 0.0
    %323 = vmatpush1.msra.mxu0 %v294
    %324 = vmatprep.subr.mxu0 0.0
    %325 = vmatpush1.msra.mxu0 %v295
    %326 = vmatprep.subr.mxu0 0.0
    %327 = vmatpush1.msra.mxu0 %v296
    %328 = vmatprep.subr.mxu0 0.0
    %329 = vmatpush1.msra.mxu0 %v297
    %330 = vmatprep.subr.mxu0 0.0
    %331 = vmatpush1.msra.mxu0 %v298
    %332 = vmatprep.subr.mxu0 0.0
    %333 = vmatpush1.msra.mxu0 %v299
    %334 = vmatprep.subr.mxu0 0.0
    %335 = vmatpush1.msra.mxu0 %v300
    %336 = vmatprep.subr.mxu0 0.0
    %337 = vmatpush1.msra.mxu0 0.0
    %338 = vmatprep.subr.mxu0 0.0
    %339 = vmatpush1.msra.mxu0 0.0
    %340 = vmatprep.subr.mxu0 0.0
    %341 = vmatpush1.msra.mxu0 0.0
    %342 = vmatprep.subr.mxu0 0.0
    %343 = vmatpush1.msra.mxu0 0.0
    %344 = vmatprep.subr.mxu0 0.0
    %345 = vmatpush1.msra.mxu0 0.0
    %346 = vmatprep.subr.mxu0 0.0
    %347 = vmatpush1.msra.mxu0 0.0
    %348 = vmatprep.subr.mxu0 0.0
    %349 = vmatpush1.msra.mxu0 0.0
    %350 = vmatprep.subr.mxu0 0.0
    %351 = vmatpush1.msra.mxu0 0.0
    %352 = vmatprep.subr.mxu0 0.0
    %353 = vmatpush1.msra.mxu0 0.0
    %354 = vmatprep.subr.mxu0 0.0
    %355 = vmatpush1.msra.mxu0 0.0
    %356 = vmatprep.subr.mxu0 0.0
    %357 = vmatpush1.msra.mxu0 0.0
    %358 = vmatprep.subr.mxu0 0.0
    %359 = vmatpush1.msra.mxu0 0.0
    %360 = vmatprep.subr.mxu0 0.0
    %361 = vmatpush1.msra.mxu0 0.0
    %362 = vmatprep.subr.mxu0 0.0
    %363 = vmatpush1.msra.mxu0 0.0
    %364 = vmatprep.subr.mxu0 0.0
    %365 = vmatpush1.msra.mxu0 0.0
    %366 = vmatprep.subr.mxu0 0.0
    %367 = vmatpush1.msra.mxu0 0.0
    %368 = vmatprep.subr.mxu0 0.0
    %369 = vmatpush1.msra.mxu0 0.0
    %370 = vmatprep.subr.mxu0 0.0
    %371 = vmatpush1.msra.mxu0 0.0
    %372 = vmatprep.subr.mxu0 0.0
    %373 = vmatpush1.msra.mxu0 0.0
    %374 = vmatprep.subr.mxu0 0.0
    %375 = vmatpush1.msra.mxu0 0.0
    %376 = vmatprep.subr.mxu0 0.0
    %377 = vmatpush1.msra.mxu0 0.0
    %378 = vmatprep.subr.mxu0 0.0
    %379 = vmatpush1.msra.mxu0 0.0
    %380 = vmatprep.mubr.f32.mxu0 0.0
    %381 = vmatmul.mubr.f32.gmra.mrb[0].mxu0 %v302
    %v382 = vpop.f32.mrb[0].mxu0
    %v383 = vadd.f32 0.0, %v382
    %v384 = vpop.f32.mrb[0].mxu0
    %385 = vmatprep.mubr.f32.mxu0 0.0
    %386 = vmatmul.mubr.f32.gmra.mrb[0].mxu0 %v305
    %v387 = vpop.f32.mrb[0].mxu0
    %v388 = vadd.f32 0.0, %v387
    %v389 = vpop.f32.mrb[0].mxu0
    %390 = vmatprep.mubr.f32.mxu0 0.0
    %391 = vmatmul.mubr.f32.gmra.mrb[0].mxu0 %v308
    %v392 = vpop.f32.mrb[0].mxu0
    %v393 = vadd.f32 0.0, %v392
    %v394 = vpop.f32.mrb[0].mxu0
    %395 = vmatprep.mubr.f32.mxu0 0.0
    %396 = vmatmul.mubr.f32.gmra.mrb[0].mxu0 %v311
    %v397 = vpop.f32.mrb[0].mxu0
    %v398 = vadd.f32 0.0, %v397
    %v399 = vpop.f32.mrb[0].mxu0
    %400 = vmatprep.mubr.f32.mxu0 0.0
    %401 = vmatmul.mubr.f32.gmra.mrb[0].mxu0 %v314
    %v402 = vpop.f32.mrb[0].mxu0
    %v403 = vadd.f32 0.0, %v402
    %v404 = vpop.f32.mrb[0].mxu0
    %405 = vdwg.mxu0
    %v406 = vadd.f32 %v262, %v383
    %v407 = vadd.f32 %v267, %v388
    %v408 = vadd.f32 %v272, %v393
    %v409 = vadd.f32 %v277, %v398
    %v410 = vadd.f32 %v282, %v403
    %v411 = vld [vmem:[#allocation2 + $0x3] sm:$0xff]
    %v412 = vld [vmem:[#allocation2 + $0xb] sm:$0xff]
    %v413 = vld [vmem:[#allocation2 + $0x13] sm:$0xff]
    %v414 = vld [vmem:[#allocation2 + $0x1b] sm:$0xff]
    %v415 = vld [vmem:[#allocation2 + $0x23] sm:$0xf]
    %s416 = scalar_lea.vmem [#allocation5], 240
    %v417 = vld [vmem:[%s416] sm:$0xff]
    %v418 = vld [vmem:[%s416 + $0x8] sm:$0xff]
    %v419 = vld [vmem:[%s416 + $0x10] sm:$0xff]
    %v420 = vld [vmem:[%s416 + $0x18] sm:$0xff]
    %v421 = vld [vmem:[%s416 + $0x20] sm:$0xff]
    %v422 = vld [vmem:[%s416 + $0x28] sm:$0xff]
    %v423 = vld [vmem:[%s416 + $0x30] sm:$0xff]
    %v424 = vld [vmem:[%s416 + $0x38] sm:$0xff]
    %v425 = vld [vmem:[%s416 + $0x40] sm:$0xff]
    %v426 = vld [vmem:[%s416 + $0x48] sm:$0xff]
    %v428 = vsel %vm74, %v411, 0
    %v431 = vsel %vm74, %v412, 0
    %v434 = vsel %vm74, %v413, 0
    %v437 = vsel %vm74, %v414, 0
    %v440 = vsel %vm74, %v415, 0
    %442 = vmatprep.subr.mxu0 0.0
    %443 = vmatpush1.msra.mxu0 %v417
    %444 = vmatprep.subr.mxu0 0.0
    %445 = vmatpush1.msra.mxu0 %v418
    %446 = vmatprep.subr.mxu0 0.0
    %447 = vmatpush1.msra.mxu0 %v419
    %448 = vmatprep.subr.mxu0 0.0
    %449 = vmatpush1.msra.mxu0 %v420
    %450 = vmatprep.subr.mxu0 0.0
    %451 = vmatpush1.msra.mxu0 %v421
    %452 = vmatprep.subr.mxu0 0.0
    %453 = vmatpush1.msra.mxu0 %v422
    %454 = vmatprep.subr.mxu0 0.0
    %455 = vmatpush1.msra.mxu0 %v423
    %456 = vmatprep.subr.mxu0 0.0
    %457 = vmatpush1.msra.mxu0 %v424
    %458 = vmatprep.subr.mxu0 0.0
    %459 = vmatpush1.msra.mxu0 %v425
    %460 = vmatprep.subr.mxu0 0.0
    %461 = vmatpush1.msra.mxu0 %v426
    %462 = vmatprep.subr.mxu0 0.0
    %463 = vmatpush1.msra.mxu0 0.0
    %464 = vmatprep.subr.mxu0 0.0
    %465 = vmatpush1.msra.mxu0 0.0
    %466 = vmatprep.subr.mxu0 0.0
    %467 = vmatpush1.msra.mxu0 0.0
    %468 = vmatprep.subr.mxu0 0.0
    %469 = vmatpush1.msra.mxu0 0.0
    %470 = vmatprep.subr.mxu0 0.0
    %471 = vmatpush1.msra.mxu0 0.0
    %472 = vmatprep.subr.mxu0 0.0
    %473 = vmatpush1.msra.mxu0 0.0
    %474 = vmatprep.subr.mxu0 0.0
    %475 = vmatpush1.msra.mxu0 0.0
    %476 = vmatprep.subr.mxu0 0.0
    %477 = vmatpush1.msra.mxu0 0.0
    %478 = vmatprep.subr.mxu0 0.0
    %479 = vmatpush1.msra.mxu0 0.0
    %480 = vmatprep.subr.mxu0 0.0
    %481 = vmatpush1.msra.mxu0 0.0
    %482 = vmatprep.subr.mxu0 0.0
    %483 = vmatpush1.msra.mxu0 0.0
    %484 = vmatprep.subr.mxu0 0.0
    %485 = vmatpush1.msra.mxu0 0.0
    %486 = vmatprep.subr.mxu0 0.0
    %487 = vmatpush1.msra.mxu0 0.0
    %488 = vmatprep.subr.mxu0 0.0
    %489 = vmatpush1.msra.mxu0 0.0
    %490 = vmatprep.subr.mxu0 0.0
    %491 = vmatpush1.msra.mxu0 0.0
    %492 = vmatprep.subr.mxu0 0.0
    %493 = vmatpush1.msra.mxu0 0.0
    %494 = vmatprep.subr.mxu0 0.0
    %495 = vmatpush1.msra.mxu0 0.0
    %496 = vmatprep.subr.mxu0 0.0
    %497 = vmatpush1.msra.mxu0 0.0
    %498 = vmatprep.subr.mxu0 0.0
    %499 = vmatpush1.msra.mxu0 0.0
    %500 = vmatprep.subr.mxu0 0.0
    %501 = vmatpush1.msra.mxu0 0.0
    %502 = vmatprep.subr.mxu0 0.0
    %503 = vmatpush1.msra.mxu0 0.0
    %504 = vmatprep.subr.mxu0 0.0
    %505 = vmatpush1.msra.mxu0 0.0
    %506 = vmatprep.mubr.f32.mxu0 0.0
    %507 = vmatmul.mubr.f32.gmra.mrb[0].mxu0 %v428
    %v508 = vpop.f32.mrb[0].mxu0
    %v509 = vadd.f32 0.0, %v508
    %v510 = vpop.f32.mrb[0].mxu0
    %511 = vmatprep.mubr.f32.mxu0 0.0
    %512 = vmatmul.mubr.f32.gmra.mrb[0].mxu0 %v431
    %v513 = vpop.f32.mrb[0].mxu0
    %v514 = vadd.f32 0.0, %v513
    %v515 = vpop.f32.mrb[0].mxu0
    %516 = vmatprep.mubr.f32.mxu0 0.0
    %517 = vmatmul.mubr.f32.gmra.mrb[0].mxu0 %v434
    %v518 = vpop.f32.mrb[0].mxu0
    %v519 = vadd.f32 0.0, %v518
    %v520 = vpop.f32.mrb[0].mxu0
    %521 = vmatprep.mubr.f32.mxu0 0.0
    %522 = vmatmul.mubr.f32.gmra.mrb[0].mxu0 %v437
    %v523 = vpop.f32.mrb[0].mxu0
    %v524 = vadd.f32 0.0, %v523
    %v525 = vpop.f32.mrb[0].mxu0
    %526 = vmatprep.mubr.f32.mxu0 0.0
    %527 = vmatmul.mubr.f32.gmra.mrb[0].mxu0 %v440
    %v528 = vpop.f32.mrb[0].mxu0
    %v529 = vadd.f32 0.0, %v528
    %v530 = vpop.f32.mrb[0].mxu0
    %531 = vdwg.mxu0
    %v532 = vadd.f32 %v406, %v509
    %v533 = vadd.f32 %v407, %v514
    %v534 = vadd.f32 %v408, %v519
    %v535 = vadd.f32 %v409, %v524
    %v536 = vadd.f32 %v410, %v529
    %v537 = vld [vmem:[#allocation2 + $0x4] sm:$0xff]
    %v538 = vld [vmem:[#allocation2 + $0xc] sm:$0xff]
    %v539 = vld [vmem:[#allocation2 + $0x14] sm:$0xff]
    %v540 = vld [vmem:[#allocation2 + $0x1c] sm:$0xff]
    %v541 = vld [vmem:[#allocation2 + $0x24] sm:$0xf]
    %s542 = scalar_lea.vmem [#allocation5], 320
    %v543 = vld [vmem:[%s542] sm:$0xff]
    %v544 = vld [vmem:[%s542 + $0x8] sm:$0xff]
    %v545 = vld [vmem:[%s542 + $0x10] sm:$0xff]
    %v546 = vld [vmem:[%s542 + $0x18] sm:$0xff]
    %v547 = vld [vmem:[%s542 + $0x20] sm:$0xff]
    %v548 = vld [vmem:[%s542 + $0x28] sm:$0xff]
    %v549 = vld [vmem:[%s542 + $0x30] sm:$0xff]
    %v550 = vld [vmem:[%s542 + $0x38] sm:$0xff]
    %v551 = vld [vmem:[%s542 + $0x40] sm:$0xff]
    %v552 = vld [vmem:[%s542 + $0x48] sm:$0xff]
    %v554 = vsel %vm74, %v537, 0
    %v557 = vsel %vm74, %v538, 0
    %v560 = vsel %vm74, %v539, 0
    %v563 = vsel %vm74, %v540, 0
    %v566 = vsel %vm74, %v541, 0
    %568 = vmatprep.subr.mxu0 0.0
    %569 = vmatpush1.msra.mxu0 %v543
    %570 = vmatprep.subr.mxu0 0.0
    %571 = vmatpush1.msra.mxu0 %v544
    %572 = vmatprep.subr.mxu0 0.0
    %573 = vmatpush1.msra.mxu0 %v545
    %574 = vmatprep.subr.mxu0 0.0
    %575 = vmatpush1.msra.mxu0 %v546
    %576 = vmatprep.subr.mxu0 0.0
    %577 = vmatpush1.msra.mxu0 %v547
    %578 = vmatprep.subr.mxu0 0.0
    %579 = vmatpush1.msra.mxu0 %v548
    %580 = vmatprep.subr.mxu0 0.0
    %581 = vmatpush1.msra.mxu0 %v549
    %582 = vmatprep.subr.mxu0 0.0
    %583 = vmatpush1.msra.mxu0 %v550
    %584 = vmatprep.subr.mxu0 0.0
    %585 = vmatpush1.msra.mxu0 %v551
    %586 = vmatprep.subr.mxu0 0.0
    %587 = vmatpush1.msra.mxu0 %v552
    %588 = vmatprep.subr.mxu0 0.0
    %589 = vmatpush1.msra.mxu0 0.0
    %590 = vmatprep.subr.mxu0 0.0
    %591 = vmatpush1.msra.mxu0 0.0
    %592 = vmatprep.subr.mxu0 0.0
    %593 = vmatpush1.msra.mxu0 0.0
    %594 = vmatprep.subr.mxu0 0.0
    %595 = vmatpush1.msra.mxu0 0.0
    %596 = vmatprep.subr.mxu0 0.0
    %597 = vmatpush1.msra.mxu0 0.0
    %598 = vmatprep.subr.mxu0 0.0
    %599 = vmatpush1.msra.mxu0 0.0
    %600 = vmatprep.subr.mxu0 0.0
    %601 = vmatpush1.msra.mxu0 0.0
    %602 = vmatprep.subr.mxu0 0.0
    %603 = vmatpush1.msra.mxu0 0.0
    %604 = vmatprep.subr.mxu0 0.0
    %605 = vmatpush1.msra.mxu0 0.0
    %606 = vmatprep.subr.mxu0 0.0
    %607 = vmatpush1.msra.mxu0 0.0
    %608 = vmatprep.subr.mxu0 0.0
    %609 = vmatpush1.msra.mxu0 0.0
    %610 = vmatprep.subr.mxu0 0.0
    %611 = vmatpush1.msra.mxu0 0.0
    %612 = vmatprep.subr.mxu0 0.0
    %613 = vmatpush1.msra.mxu0 0.0
    %614 = vmatprep.subr.mxu0 0.0
    %615 = vmatpush1.msra.mxu0 0.0
    %616 = vmatprep.subr.mxu0 0.0
    %617 = vmatpush1.msra.mxu0 0.0
    %618 = vmatprep.subr.mxu0 0.0
    %619 = vmatpush1.msra.mxu0 0.0
    %620 = vmatprep.subr.mxu0 0.0
    %621 = vmatpush1.msra.mxu0 0.0
    %622 = vmatprep.subr.mxu0 0.0
    %623 = vmatpush1.msra.mxu0 0.0
    %624 = vmatprep.subr.mxu0 0.0
    %625 = vmatpush1.msra.mxu0 0.0
    %626 = vmatprep.subr.mxu0 0.0
    %627 = vmatpush1.msra.mxu0 0.0
    %628 = vmatprep.subr.mxu0 0.0
    %629 = vmatpush1.msra.mxu0 0.0
    %630 = vmatprep.subr.mxu0 0.0
    %631 = vmatpush1.msra.mxu0 0.0
    %632 = vmatprep.mubr.f32.mxu0 0.0
    %633 = vmatmul.mubr.f32.gmra.mrb[0].mxu0 %v554
    %v634 = vpop.f32.mrb[0].mxu0
    %v635 = vadd.f32 0.0, %v634
    %v636 = vpop.f32.mrb[0].mxu0
    %637 = vmatprep.mubr.f32.mxu0 0.0
    %638 = vmatmul.mubr.f32.gmra.mrb[0].mxu0 %v557
    %v639 = vpop.f32.mrb[0].mxu0
    %v640 = vadd.f32 0.0, %v639
    %v641 = vpop.f32.mrb[0].mxu0
    %642 = vmatprep.mubr.f32.mxu0 0.0
    %643 = vmatmul.mubr.f32.gmra.mrb[0].mxu0 %v560
    %v644 = vpop.f32.mrb[0].mxu0
    %v645 = vadd.f32 0.0, %v644
    %v646 = vpop.f32.mrb[0].mxu0
    %647 = vmatprep.mubr.f32.mxu0 0.0
    %648 = vmatmul.mubr.f32.gmra.mrb[0].mxu0 %v563
    %v649 = vpop.f32.mrb[0].mxu0
    %v650 = vadd.f32 0.0, %v649
    %v651 = vpop.f32.mrb[0].mxu0
    %652 = vmatprep.mubr.f32.mxu0 0.0
    %653 = vmatmul.mubr.f32.gmra.mrb[0].mxu0 %v566
    %v654 = vpop.f32.mrb[0].mxu0
    %v655 = vadd.f32 0.0, %v654
    %v656 = vpop.f32.mrb[0].mxu0
    %657 = vdwg.mxu0
    %v658 = vadd.f32 %v532, %v635
    %v659 = vadd.f32 %v533, %v640
    %v660 = vadd.f32 %v534, %v645
    %v661 = vadd.f32 %v535, %v650
    %v662 = vadd.f32 %v536, %v655
    %v663 = vld [vmem:[%s2] sm:$0x1]
    %v665 = vlaneseq
    %v666 = vshrl.u32 %v665, 7
    %v667 = vsub.s32 0, %v666
    %v668 = vrot.slane %v663, %v667
    %v670 = vadd.f32 %v658, %v668
    %v671 = vadd.f32 %v659, %v668
    %v672 = vadd.f32 %v660, %v668
    %v673 = vadd.f32 %v661, %v668
    %v674 = vadd.f32 %v662, %v668
    %v675 = vxor.u32 %v670, 2147483648
    %v676 = vxor.u32 %v671, 2147483648
    %v677 = vxor.u32 %v672, 2147483648
    %v678 = vxor.u32 %v673, 2147483648
    %v679 = vxor.u32 %v674, 2147483648
    %v680 = vmul.f32 %v675, 1.442695
    %v681 = vpow.pop %v680
    %v682 = vmul.f32 %v676, 1.442695
    %v683 = vpow.pop %v682
    %v684 = vmul.f32 %v677, 1.442695
    %v685 = vpow.pop %v684
    %v686 = vmul.f32 %v678, 1.442695
    %v687 = vpow.pop %v686
    %v688 = vmul.f32 %v679, 1.442695
    %v689 = vpow.pop %v688
    %v690 = vadd.f32 %v681, 1.0
    %v691 = vadd.f32 %v683, 1.0
    %v692 = vadd.f32 %v685, 1.0
    %v693 = vadd.f32 %v687, 1.0
    %v694 = vadd.f32 %v689, 1.0
    %v695 = vrcp.pop %v690
    %v696 = vmul.f32 1.0, %v695
    %v697 = vrcp.pop %v691
    %v698 = vmul.f32 1.0, %v697
    %v699 = vrcp.pop %v692
    %v700 = vmul.f32 1.0, %v699
    %v701 = vrcp.pop %v693
    %v702 = vmul.f32 1.0, %v701
    %v703 = vrcp.pop %v694
    %v704 = vmul.f32 1.0, %v703
    %v705 = vmul.f32 %v670, %v696
    %v706 = vmul.f32 %v671, %v698
    %v707 = vmul.f32 %v672, %v700
    %v708 = vmul.f32 %v673, %v702
    %v709 = vmul.f32 %v674, %v704
    %710 = vst [vmem:[#allocation7] sm:$0xff] %v705
    %711 = vst [vmem:[#allocation7 + $0x8] sm:$0xff] %v706
    %s712 = scalar_lea.vmem [#allocation7], 16
    %713 = vst [vmem:[%s712 - $0x4] sm:$0xf0] %v707
    %714 = vst [vmem:[%s712 + $0x4] sm:$0xff] %v708
    %715 = vst [vmem:[%s712 + $0xc] sm:$0xf] %v709
    // Predicated region
    $region22: #{tpu_custom_call.1} parent=1 // pred_check
      _
    $region23: #{tpu_custom_call.1} parent=1 // pred_check_branch
      %717 = sbr.rel (0) target = $region25
    $region24: #{tpu_custom_call.1} parent=1 // pred_region
      %s719 = ssub.s32 512, 512
      %720 = vsyncadd [#allocation4], %s719
      %s721 = sshll.u32 [#allocation7], 4
      %s722 = int_to_ptr.vmem [resolvable:$true] %s721
      %727 = dma.vmem_to_hbm [thread:$0]  %s722, 512, %s3, [#allocation4], 128, 128, 8
    $region25: #{tpu_custom_call.1} parent=1 // pred_fallthru
      _
    // Predicated region
    $region26: #{tpu_custom_call.1} parent=1 // pred_check
      _
    $region27: #{tpu_custom_call.1} parent=1 // pred_check_branch
      %729 = sbr.rel (0) target = $region29
    $region28: #{tpu_custom_call.1} parent=1 // pred_region
      %730 = dma.done [#allocation4], 512
    $region29: #{tpu_custom_call.1} parent=1 // pred_fallthru
      _
    %731 = vsyncpa [#allocation3], 1
    %732 = vsyncpa [#allocation6], 1
    %733 = vsyncpa [#allocation4], 1

</llo_original>
